<compile_context>
chip_gen: v5e
topology: v5e:2x2
jax: 0.10.0
libtpu: 0.0.40
codegen_flags: <defaults>
</compile_context>

<pallas_src>
import numpy as np
import jax
import jax.numpy as jnp
from jax.experimental import pallas as pl
from jax.experimental.pallas import tpu as pltpu

EQU_NX = 20
N_DOF = (EQU_NX + 1) ** 2        # 441 CG-P1 dofs of the 2D mesh
M_MODES = 20                     # m (reduced rank)
Q = 0.1                          # init scale, matches q in __init__


def sylvester_kernel(z_ref, at_ref, wt_ref, b_ref, ans_ref, x_ref, logdet_ref):
    z = z_ref[...]                                                     # (TB, N)

    # hidden.T = z @ A.T + b.T   (A = r2 @ Psi_r.T @ M, precomputed as At = A.T)
    hidden_t = jnp.dot(z, at_ref[...],
                       preferred_element_type=jnp.float32) + b_ref[...]  # (TB, m)
    h = jnp.tanh(hidden_t)                                             # (TB, m)

    # x = z + (Psi_r @ r1 @ tanh(hidden)).T = z + h @ (Psi_r @ r1).T
    x_ref[...] = z + jnp.dot(h, wt_ref[...],
                             preferred_element_type=jnp.float32)       # (TB, N)

    # psi = 1 - tanh(hidden)^2 ; w1 = diag1*diag2*psi + 1   (w1 > 0 always)
    # log det = sum_m log1p(ans * psi); the m-reduction rides the MXU as a
    # (TB, m) @ (m, 1) dot so no XLU cross-lane reduce / relayout is needed.
    psi_act = 1.0 - h * h                                              # (TB, m)
    vals = jnp.log1p(ans_ref[...] * psi_act)                           # (TB, m)
    ones_m = jnp.ones((vals.shape[1], 1), jnp.float32)
    logdet_ref[...] = jnp.dot(vals, ones_m,
                              preferred_element_type=jnp.float32)      # (TB, 1)


def _round_up(x, mult):
    return ((x + mult - 1) // mult) * mult


def _batch_tile(batch):
    # Tiny batches: a single padded 8-row block.
    if batch <= 8:
        return 8
    # Otherwise: big tiles to amortize per-grid-step overhead, but never so big
    # that the grid collapses to one step (keep both v7x TensorCores busy), and
    # capped at 1024 rows so double-buffered tiles stay inside v5e's 16 MiB
    # default scoped VMEM.
    return min(1024, _round_up(pl.cdiv(batch, 2), 8))


def _sylvester_flow_impl(z, MtPsi, Psi_r, R1, R2, dia1_, b):
    z = z.astype(jnp.float32)
    B, n = z.shape
    m = R1.shape[0]

    # constrained_r1 / constrained_r2 (parameter glue, plain JAX)
    diag1 = jnp.tanh(dia1_.astype(jnp.float32)) + 0.1 ** 5
    r1 = jnp.triu(R1, k=1) + jnp.diag(diag1)
    diag2 = jnp.ones((m,), jnp.float32)
    r2 = jnp.triu(R2, k=1) + jnp.diag(diag2)
    ans = diag1 * diag2                                                # (m,)

    # Small per-call operands (M.T @ Psi_r was cached outside the call).
    At = (MtPsi @ r2.T).astype(jnp.float32)                            # (N, m)
    Wt = (r1.T @ Psi_r.T).astype(jnp.float32)                          # (m, N)

    # Batch tiling with wrapper-side padding (handles ragged B).
    tb = _batch_tile(B)
    grid_b = pl.cdiv(B, tb)
    Bp = grid_b * tb
    z_p = jnp.pad(z, ((0, Bp - B), (0, 0))) if Bp != B else z

    x, logdet = pl.pallas_call(
        sylvester_kernel,
        out_shape=(jax.ShapeDtypeStruct((Bp, n), jnp.float32),
                   jax.ShapeDtypeStruct((Bp, 1), jnp.float32)),
        grid=(grid_b,),
        in_specs=[
            pl.BlockSpec((tb, n), lambda i: (i, 0)),    # z tile
            pl.BlockSpec((n, m), lambda i: (0, 0)),     # At (resident)
            pl.BlockSpec((m, n), lambda i: (0, 0)),     # Wt (resident)
            pl.BlockSpec((1, m), lambda i: (0, 0)),     # b.T
            pl.BlockSpec((1, m), lambda i: (0, 0)),     # ans
        ],
        out_specs=(
            pl.BlockSpec((tb, n), lambda i: (i, 0)),    # x tile
            pl.BlockSpec((tb, 1), lambda i: (i, 0)),    # log_det
        ),
        compiler_params=pltpu.CompilerParams(
            dimension_semantics=("parallel",)),
    )(z_p, At, Wt, b.reshape(1, m).astype(jnp.float32), ans.reshape(1, m))

    return x[:B], logdet[:B, 0]


# Jit the whole wrapper so the small parameter glue fuses/overlaps with the
# pallas_call.
sylvester_flow = jax.jit(_sylvester_flow_impl)


def reference_forward(z, M_dense, Psi_r, R1, R2, dia1_, b):
    """Pure-JAX transcription of the torch forward (column oriented)."""
    m = R1.shape[0]
    diag1 = jnp.tanh(dia1_) + 0.1 ** 5
    r1 = jnp.triu(R1, k=1) + jnp.diag(diag1)
    diag2 = jnp.ones((m,), jnp.float32)
    r2 = jnp.triu(R2, k=1) + jnp.diag(diag2)
    hidden = r2 @ Psi_r.T @ (M_dense @ z.T) + b                        # (m, B)
    x = z + (Psi_r @ r1 @ jnp.tanh(hidden)).T
    psi = 1.0 - jnp.tanh(hidden) ** 2
    w1 = (diag1 * diag2).reshape(m, 1) * psi + 1.0
    return x, jnp.log(jnp.prod(w1, axis=0))


if __name__ == "__main__":
    key = jax.random.PRNGKey(0)
    k_z, k_m, k_psi, k_r1, k_r2, k_d, k_b, k_z2, k_z3 = jax.random.split(key, 9)

    B = 2
    # TODO(synk): M (FEM mass matrix from GaussianElliptic2 on Domain2D) and
    # Psi_r (prior eigenbasis) come from a FEM assembly with no Pallas/JAX
    # equivalent; synthetic deterministic stand-ins of the right shape/dtype.
    A = jax.random.normal(k_m, (N_DOF, N_DOF), jnp.float32) * 0.01
    M_dense = 0.5 * (A + A.T) + 0.05 * jnp.eye(N_DOF, dtype=jnp.float32)
    Psi_r = jax.random.normal(k_psi, (N_DOF, M_MODES), jnp.float32) * 0.1

    # Parameter-independent product, computed once (not per flow call).
    MtPsi = (M_dense.T @ Psi_r).astype(jnp.float32)                    # (N, m)

    # module parameters (q * rand, deterministic)
    R1 = Q * jax.random.uniform(k_r1, (M_MODES, M_MODES), jnp.float32)
    R2 = Q * jax.random.uniform(k_r2, (M_MODES, M_MODES), jnp.float32)
    dia1_ = Q * jax.random.uniform(k_d, (M_MODES,), jnp.float32)
    b = Q * jax.random.uniform(k_b, (M_MODES, 1), jnp.float32)

    # --- small batch (padded single-block path) ---
    z = jax.random.normal(k_z, (B, N_DOF), jnp.float32)
    x, log_det = sylvester_flow(z, MtPsi, Psi_r, R1, R2, dia1_, b)
    jax.block_until_ready((x, log_det))
    x_ref, ld_ref = reference_forward(z, M_dense, Psi_r, R1, R2, dia1_, b)
    np.testing.assert_allclose(np.asarray(x), np.asarray(x_ref),
                               rtol=1e-4, atol=1e-4)
    np.testing.assert_allclose(np.asarray(log_det), np.asarray(ld_ref),
                               rtol=1e-4, atol=1e-4)

    # --- larger batch exercises the gridded (2-step, "parallel") path ---
    B2 = 256
    z2 = jax.random.normal(k_z2, (B2, N_DOF), jnp.float32)
    x2, log_det2 = sylvester_flow(z2, MtPsi, Psi_r, R1, R2, dia1_, b)
    jax.block_until_ready((x2, log_det2))
    x2_ref, ld2_ref = reference_forward(z2, M_dense, Psi_r, R1, R2, dia1_, b)
    np.testing.assert_allclose(np.asarray(x2), np.asarray(x2_ref),
                               rtol=1e-4, atol=1e-4)
    np.testing.assert_allclose(np.asarray(log_det2), np.asarray(ld2_ref),
                               rtol=1e-4, atol=1e-4)

    # --- ragged batch exercises the padding / tail-tile path ---
    B3 = 300
    z3 = jax.random.normal(k_z3, (B3, N_DOF), jnp.float32)
    x3, log_det3 = sylvester_flow(z3, MtPsi, Psi_r, R1, R2, dia1_, b)
    jax.block_until_ready((x3, log_det3))
    x3_ref, ld3_ref = reference_forward(z3, M_dense, Psi_r, R1, R2, dia1_, b)
    np.testing.assert_allclose(np.asarray(x3), np.asarray(x3_ref),
                               rtol=1e-4, atol=1e-4)
    np.testing.assert_allclose(np.asarray(log_det3), np.asarray(ld3_ref),
                               rtol=1e-4, atol=1e-4)

    print("KERNEL_OK")
</pallas_src>

<mosaic_0001>
module attributes {stable_mosaic.version = 11 : i64} {
  func.func @sylvester_kernel(%arg0: i32, %arg1: memref<8x441xf32, #tpu.memory_space<vmem>>, %arg2: memref<441x20xf32, #tpu.memory_space<vmem>>, %arg3: memref<20x441xf32, #tpu.memory_space<vmem>>, %arg4: memref<1x20xf32, #tpu.memory_space<vmem>>, %arg5: memref<1x20xf32, #tpu.memory_space<vmem>>, %arg6: memref<8x441xf32, #tpu.memory_space<vmem>>, %arg7: memref<8x1xf32, #tpu.memory_space<vmem>>) attributes {dimension_semantics = [#tpu.dimension_semantics<parallel>], iteration_bounds = array<i64: 1>, scalar_prefetch = 0 : i64, scratch_operands = 0 : i64, tpu.core_type = #tpu.core_type<tc>, window_params = [{transform_indices = @transform_0, window_bounds = array<i64: 8, 441>}, {pipeline_mode = #tpu.pipeline_mode<synchronous>, transform_indices = @transform_1, window_bounds = array<i64: 441, 20>}, {pipeline_mode = #tpu.pipeline_mode<synchronous>, transform_indices = @transform_2, window_bounds = array<i64: 20, 441>}, {pipeline_mode = #tpu.pipeline_mode<synchronous>, transform_indices = @transform_3, window_bounds = array<i64: 1, 20>}, {pipeline_mode = #tpu.pipeline_mode<synchronous>, transform_indices = @transform_4, window_bounds = array<i64: 1, 20>}, {transform_indices = @transform_5, window_bounds = array<i64: 8, 441>}, {transform_indices = @transform_6, window_bounds = array<i64: 8, 1>}]} {
    %c0 = arith.constant 0 : index
    %c0_0 = arith.constant 0 : index
    %0 = vector.load %arg1[%c0, %c0_0] : memref<8x441xf32, #tpu.memory_space<vmem>>, vector<8x441xf32>
    %c0_1 = arith.constant 0 : index
    %c0_2 = arith.constant 0 : index
    %1 = vector.load %arg2[%c0_1, %c0_2] : memref<441x20xf32, #tpu.memory_space<vmem>>, vector<441x20xf32>
    %cst = arith.constant dense<0.000000e+00> : vector<8x20xf32>
    %2 = tpu.matmul %0, %1, %cst {dimension_numbers = #tpu.dot_dimension_numbers<[1], [0], [0], [1], [0, 0, 1, 1], [], []>} : vector<8x441xf32>, vector<441x20xf32>, vector<8x20xf32> -> vector<8x20xf32>
    %c0_3 = arith.constant 0 : index
    %c0_4 = arith.constant 0 : index
    %3 = vector.load %arg4[%c0_3, %c0_4] : memref<1x20xf32, #tpu.memory_space<vmem>>, vector<1x20xf32>
    %4 = vector.broadcast %3 : vector<1x20xf32> to vector<8x20xf32>
    %5 = arith.addf %2, %4 : vector<8x20xf32>
    %6 = math.tanh %5 : vector<8x20xf32>
    %c0_5 = arith.constant 0 : index
    %c0_6 = arith.constant 0 : index
    %7 = vector.load %arg3[%c0_5, %c0_6] : memref<20x441xf32, #tpu.memory_space<vmem>>, vector<20x441xf32>
    %cst_7 = arith.constant dense<0.000000e+00> : vector<8x441xf32>
    %8 = tpu.matmul %6, %7, %cst_7 {dimension_numbers = #tpu.dot_dimension_numbers<[1], [0], [0], [1], [0, 0, 1, 1], [], []>} : vector<8x20xf32>, vector<20x441xf32>, vector<8x441xf32> -> vector<8x441xf32>
    %9 = arith.addf %0, %8 : vector<8x441xf32>
    %c0_8 = arith.constant 0 : index
    %c0_9 = arith.constant 0 : index
    %10 = vector.load %arg6[%c0_8, %c0_9] : memref<8x441xf32, #tpu.memory_space<vmem>>, vector<8x441xf32>
    tpu.vector_store %arg6[%c0_8, %c0_9], %9 {strides = array<i32>} : memref<8x441xf32, #tpu.memory_space<vmem>>, vector<8x441xf32>,
    %11 = arith.mulf %6, %6 : vector<8x20xf32>
    %cst_10 = arith.constant 1.000000e+00 : f32
    %12 = vector.broadcast %cst_10 : f32 to vector<8x20xf32>
    %13 = arith.subf %12, %11 : vector<8x20xf32>
    %c0_11 = arith.constant 0 : index
    %c0_12 = arith.constant 0 : index
    %14 = vector.load %arg5[%c0_11, %c0_12] : memref<1x20xf32, #tpu.memory_space<vmem>>, vector<1x20xf32>
    %15 = vector.broadcast %14 : vector<1x20xf32> to vector<8x20xf32>
    %16 = arith.mulf %15, %13 : vector<8x20xf32>
    %17 = math.log1p %16 : vector<8x20xf32>
    %cst_13 = arith.constant 1.000000e+00 : f32
    %18 = vector.broadcast %cst_13 : f32 to vector<20x1xf32>
    %cst_14 = arith.constant dense<0.000000e+00> : vector<8x1xf32>
    %19 = tpu.matmul %17, %18, %cst_14 {dimension_numbers = #tpu.dot_dimension_numbers<[1], [0], [0], [1], [0, 0, 1, 1], [], []>} : vector<8x20xf32>, vector<20x1xf32>, vector<8x1xf32> -> vector<8x1xf32>
    %c0_15 = arith.constant 0 : index
    %c0_16 = arith.constant 0 : index
    %20 = vector.load %arg7[%c0_15, %c0_16] : memref<8x1xf32, #tpu.memory_space<vmem>>, vector<8x1xf32>
    tpu.vector_store %arg7[%c0_15, %c0_16], %19 {strides = array<i32>} : memref<8x1xf32, #tpu.memory_space<vmem>>, vector<8x1xf32>,
    return
  }
  func.func @transform_0(%arg0: i32) -> (i32, i32) {
    %c0_i32 = arith.constant 0 : i32
    %c0_i32_0 = arith.constant 0 : i32
    return %arg0, %c0_i32 : i32, i32
  }
  func.func @transform_1(%arg0: i32) -> (i32, i32) {
    %c0_i32 = arith.constant 0 : i32
    %c0_i32_0 = arith.constant 0 : i32
    %c0_i32_1 = arith.constant 0 : i32
    return %c0_i32, %c0_i32_0 : i32, i32
  }
  func.func @transform_2(%arg0: i32) -> (i32, i32) {
    %c0_i32 = arith.constant 0 : i32
    %c0_i32_0 = arith.constant 0 : i32
    %c0_i32_1 = arith.constant 0 : i32
    return %c0_i32, %c0_i32_0 : i32, i32
  }
  func.func @transform_3(%arg0: i32) -> (i32, i32) {
    %c0_i32 = arith.constant 0 : i32
    %c0_i32_0 = arith.constant 0 : i32
    %c0_i32_1 = arith.constant 0 : i32
    return %c0_i32, %c0_i32_0 : i32, i32
  }
  func.func @transform_4(%arg0: i32) -> (i32, i32) {
    %c0_i32 = arith.constant 0 : i32
    %c0_i32_0 = arith.constant 0 : i32
    %c0_i32_1 = arith.constant 0 : i32
    return %c0_i32, %c0_i32_0 : i32, i32
  }
  func.func @transform_5(%arg0: i32) -> (i32, i32) {
    %c0_i32 = arith.constant 0 : i32
    %c0_i32_0 = arith.constant 0 : i32
    return %arg0, %c0_i32 : i32, i32
  }
  func.func @transform_6(%arg0: i32) -> (i32, i32) {
    %c0_i32 = arith.constant 0 : i32
    %c0_i32_0 = arith.constant 0 : i32
    return %arg0, %c0_i32 : i32, i32
  }
}

</mosaic_0001>

<llo_original>
// kernel: _sylvester_flow_impl.1
$region0: #{_sylvester_flow_impl.1}
  #allocation0 [shape = 'u32[]', space=smem, size = 0x4, offset = 0x4, fixed_abs, tag = 'smem constant byte address 0x4 - core index']
  #allocation1 [shape = 'u32[72,128]{1,0:T(1,128)}', space=vmem, size = 0x9000, scoped, tag = 'internal scratch']
  %s0 = inlined_call_operand.vmem [shape: f32[8,441], index: 0, kind: input, shape index: {}]
  %s1 = inlined_call_operand.vmem [shape: f32[441,20], index: 1, kind: input, shape index: {}]
  %s2 = inlined_call_operand.vmem [shape: f32[20,441], index: 2, kind: input, shape index: {}]
  %s3 = inlined_call_operand.vmem [shape: f32[1,20], index: 3, kind: input, shape index: {}]
  %s4 = inlined_call_operand.vmem [shape: f32[1,20], index: 4, kind: input, shape index: {}]
  %s5 = inlined_call_operand.vmem [shape: f32[8,441], index: 5, kind: output, shape index: {0}]
  %s6 = inlined_call_operand.vmem [shape: f32[8,1], index: 6, kind: output, shape index: {1}]
  %7 = xla_tuple %s5, %s6
  %s8 = sld [smem:[#allocation0]]
  $region38: #{_sylvester_flow_impl.1} parent=0
    _
  %s10 = ssub.s32 1, %s8
  %s11 = scalar_select 0, %s10, %s8
  // Predicated region
  $region2: #{_sylvester_flow_impl.1} parent=0 // pred_check
    _
  $region3: #{_sylvester_flow_impl.1} parent=0 // pred_check_branch
    %13 = sbr.rel (0) target = $region5
  $region4: #{_sylvester_flow_impl.1} parent=0 // pred_region
    _
  $region5: #{_sylvester_flow_impl.1} parent=0 // pred_fallthru
    _
  // Predicated region
  $region6: #{_sylvester_flow_impl.1} parent=0 // pred_check
    _
  $region7: #{_sylvester_flow_impl.1} parent=0 // pred_check_branch
    %15 = sbr.rel (0) target = $region9
  $region8: #{_sylvester_flow_impl.1} parent=0 // pred_region
    _
  $region9: #{_sylvester_flow_impl.1} parent=0 // pred_fallthru
    _
  // Predicated region
  $region10: #{_sylvester_flow_impl.1} parent=0 // pred_check
    _
  $region11: #{_sylvester_flow_impl.1} parent=0 // pred_check_branch
    %17 = sbr.rel (0) target = $region13
  $region12: #{_sylvester_flow_impl.1} parent=0 // pred_region
    _
  $region13: #{_sylvester_flow_impl.1} parent=0 // pred_fallthru
    _
  // Predicated region
  $region14: #{_sylvester_flow_impl.1} parent=0 // pred_check
    _
  $region15: #{_sylvester_flow_impl.1} parent=0 // pred_check_branch
    %19 = sbr.rel (0) target = $region17
  $region16: #{_sylvester_flow_impl.1} parent=0 // pred_region
    _
  $region17: #{_sylvester_flow_impl.1} parent=0 // pred_fallthru
    _
  // Predicated region
  $region18: #{_sylvester_flow_impl.1} parent=0 // pred_check
    _
  $region19: #{_sylvester_flow_impl.1} parent=0 // pred_check_branch
    %21 = sbr.rel (0) target = $region21
  $region20: #{_sylvester_flow_impl.1} parent=0 // pred_region
    _
  $region21: #{_sylvester_flow_impl.1} parent=0 // pred_fallthru
    _
  %v22 = vld [vmem:[%s0] sm:$0xff]
  %v23 = vld [vmem:[%s0 + $0x8] sm:$0xff]
  %v24 = vld [vmem:[%s0 + $0x10] sm:$0xff]
  %v25 = vld [vmem:[%s0 + $0x18] sm:$0xff]
  %v26 = vld [vmem:[%s1] sm:$0xff]
  %v27 = vld [vmem:[%s1 + $0x8] sm:$0xff]
  %v28 = vld [vmem:[%s1 + $0x10] sm:$0xff]
  %v29 = vld [vmem:[%s1 + $0x18] sm:$0xff]
  %v30 = vld [vmem:[%s1 + $0x20] sm:$0xff]
  %v31 = vld [vmem:[%s1 + $0x28] sm:$0xff]
  %v32 = vld [vmem:[%s1 + $0x30] sm:$0xff]
  %v33 = vld [vmem:[%s1 + $0x38] sm:$0xff]
  %v34 = vld [vmem:[%s1 + $0x40] sm:$0xff]
  %v35 = vld [vmem:[%s1 + $0x48] sm:$0xff]
  %v36 = vld [vmem:[%s1 + $0x50] sm:$0xff]
  %v37 = vld [vmem:[%s1 + $0x58] sm:$0xff]
  %v38 = vld [vmem:[%s1 + $0x60] sm:$0xff]
  %v39 = vld [vmem:[%s1 + $0x68] sm:$0xff]
  %v40 = vld [vmem:[%s1 + $0x70] sm:$0xff]
  %v41 = vld [vmem:[%s1 + $0x78] sm:$0xff]
  %v42 = vld [vmem:[%s1 + $0x80] sm:$0xff]
  %v43 = vld [vmem:[%s1 + $0x88] sm:$0xff]
  %v44 = vld [vmem:[%s1 + $0x90] sm:$0xff]
  %v45 = vld [vmem:[%s1 + $0x98] sm:$0xff]
  %v46 = vld [vmem:[%s1 + $0xa0] sm:$0xff]
  %v47 = vld [vmem:[%s1 + $0xa8] sm:$0xff]
  %v48 = vld [vmem:[%s1 + $0xb0] sm:$0xff]
  %v49 = vld [vmem:[%s1 + $0xb8] sm:$0xff]
  %v50 = vld [vmem:[%s1 + $0xc0] sm:$0xff]
  %v51 = vld [vmem:[%s1 + $0xc8] sm:$0xff]
  %v52 = vld [vmem:[%s1 + $0xd0] sm:$0xff]
  %v53 = vld [vmem:[%s1 + $0xd8] sm:$0xff]
  %v54 = vld [vmem:[%s1 + $0xe0] sm:$0xff]
  %v55 = vld [vmem:[%s1 + $0xe8] sm:$0xff]
  %v56 = vld [vmem:[%s1 + $0xf0] sm:$0xff]
  %v57 = vld [vmem:[%s1 + $0xf8] sm:$0xff]
  %v58 = vld [vmem:[%s1 + $0x100] sm:$0xff]
  %v59 = vld [vmem:[%s1 + $0x108] sm:$0xff]
  %v60 = vld [vmem:[%s1 + $0x110] sm:$0xff]
  %v61 = vld [vmem:[%s1 + $0x118] sm:$0xff]
  %v62 = vld [vmem:[%s1 + $0x120] sm:$0xff]
  %v63 = vld [vmem:[%s1 + $0x128] sm:$0xff]
  %v64 = vld [vmem:[%s1 + $0x130] sm:$0xff]
  %v65 = vld [vmem:[%s1 + $0x138] sm:$0xff]
  %v66 = vld [vmem:[%s1 + $0x140] sm:$0xff]
  %v67 = vld [vmem:[%s1 + $0x148] sm:$0xff]
  %v68 = vld [vmem:[%s1 + $0x150] sm:$0xff]
  %v69 = vld [vmem:[%s1 + $0x158] sm:$0xff]
  %v70 = vld [vmem:[%s1 + $0x160] sm:$0xff]
  %v71 = vld [vmem:[%s1 + $0x168] sm:$0xff]
  %v72 = vld [vmem:[%s1 + $0x170] sm:$0xff]
  %v73 = vld [vmem:[%s1 + $0x178] sm:$0xff]
  %v74 = vld [vmem:[%s1 + $0x180] sm:$0xff]
  %v75 = vld [vmem:[%s1 + $0x188] sm:$0xff]
  %v76 = vld [vmem:[%s1 + $0x190] sm:$0xff]
  %v77 = vld [vmem:[%s1 + $0x198] sm:$0xff]
  %v78 = vld [vmem:[%s1 + $0x1a0] sm:$0xff]
  %v79 = vld [vmem:[%s1 + $0x1a8] sm:$0xff]
  %v80 = vld [vmem:[%s1 + $0x1b0] sm:$0xff]
  %v81 = vld [vmem:[%s1 + $0x1b8] sm:$0x1]
  %v82 = vld [vmem:[%s3] sm:$0x1]
  %v84 = vperm.slane %v82, 0
  %vm86 = vcmask 465920
  %v88 = vsel %vm86, %v25, 0
  %vm90 = vcmask 1040384
  %v92 = vsel %vm90, %v81, 0
  %94 = vmatpush.msra.mxu0 %v41
  %95 = vmatpush.msra.mxu0 %v40
  %96 = vmatpush.msra.mxu0 %v39
  %97 = vmatpush.msra.mxu0 %v38
  %98 = vmatpush.msra.mxu0 %v37
  %99 = vmatpush.msra.mxu0 %v36
  %100 = vmatpush.msra.mxu0 %v35
  %101 = vmatpush.msra.mxu0 %v34
  %102 = vmatpush.msra.mxu0 %v33
  %103 = vmatpush.msra.mxu0 %v32
  %104 = vmatpush.msra.mxu0 %v31
  %105 = vmatpush.msra.mxu0 %v30
  %106 = vmatpush.msra.mxu0 %v29
  %107 = vmatpush.msra.mxu0 %v28
  %108 = vmatpush.msra.mxu0 %v27
  %109 = vmatpush.msra.mxu0 %v26
  %110 = vmatmul.f32.gmra.mxu0 %v22
  %v111 = vpop.f32.mrf.mxu0
  %v112 = vadd.f32 %v84, %v111
  %113 = vdwg.mxu0
  %114 = vmatpush.msra.mxu0 %v57
  %115 = vmatpush.msra.mxu0 %v56
  %116 = vmatpush.msra.mxu0 %v55
  %117 = vmatpush.msra.mxu0 %v54
  %118 = vmatpush.msra.mxu0 %v53
  %119 = vmatpush.msra.mxu0 %v52
  %120 = vmatpush.msra.mxu0 %v51
  %121 = vmatpush.msra.mxu0 %v50
  %122 = vmatpush.msra.mxu0 %v49
  %123 = vmatpush.msra.mxu0 %v48
  %124 = vmatpush.msra.mxu0 %v47
  %125 = vmatpush.msra.mxu0 %v46
  %126 = vmatpush.msra.mxu0 %v45
  %127 = vmatpush.msra.mxu0 %v44
  %128 = vmatpush.msra.mxu0 %v43
  %129 = vmatpush.msra.mxu0 %v42
  %130 = vmatmul.f32.gmra.mxu0 %v23
  %v131 = vpop.f32.mrf.mxu0
  %v132 = vadd.f32 %v112, %v131
  %133 = vdwg.mxu0
  %134 = vmatpush.msra.mxu0 %v73
  %135 = vmatpush.msra.mxu0 %v72
  %136 = vmatpush.msra.mxu0 %v71
  %137 = vmatpush.msra.mxu0 %v70
  %138 = vmatpush.msra.mxu0 %v69
  %139 = vmatpush.msra.mxu0 %v68
  %140 = vmatpush.msra.mxu0 %v67
  %141 = vmatpush.msra.mxu0 %v66
  %142 = vmatpush.msra.mxu0 %v65
  %143 = vmatpush.msra.mxu0 %v64
  %144 = vmatpush.msra.mxu0 %v63
  %145 = vmatpush.msra.mxu0 %v62
  %146 = vmatpush.msra.mxu0 %v61
  %147 = vmatpush.msra.mxu0 %v60
  %148 = vmatpush.msra.mxu0 %v59
  %149 = vmatpush.msra.mxu0 %v58
  %150 = vmatmul.f32.gmra.mxu0 %v24
  %v151 = vpop.f32.mrf.mxu0
  %v152 = vadd.f32 %v132, %v151
  %153 = vdwg.mxu0
  %154 = vmatpush.msra.mxu0 0.0
  %155 = vmatpush.msra.mxu0 0.0
  %156 = vmatpush.msra.mxu0 0.0
  %157 = vmatpush.msra.mxu0 0.0
  %158 = vmatpush.msra.mxu0 0.0
  %159 = vmatpush.msra.mxu0 0.0
  %160 = vmatpush.msra.mxu0 0.0
  %161 = vmatpush.msra.mxu0 0.0
  %162 = vmatpush.msra.mxu0 %v92
  %163 = vmatpush.msra.mxu0 %v80
  %164 = vmatpush.msra.mxu0 %v79
  %165 = vmatpush.msra.mxu0 %v78
  %166 = vmatpush.msra.mxu0 %v77
  %167 = vmatpush.msra.mxu0 %v76
  %168 = vmatpush.msra.mxu0 %v75
  %169 = vmatpush.msra.mxu0 %v74
  %170 = vmatmul.f32.gmra.mxu0 %v88
  %v171 = vpop.f32.mrf.mxu0
  %v172 = vadd.f32 %v152, %v171
  %173 = vdwg.mxu0
  %v174 = vtanh.pop %v172
  %v175 = vld [vmem:[%s2] sm:$0xff]
  %v176 = vld [vmem:[%s2 + $0x8] sm:$0xff]
  %v177 = vld [vmem:[%s2 + $0x10] sm:$0xff]
  %v178 = vld [vmem:[%s2 + $0x18] sm:$0xff]
  %v179 = vld [vmem:[%s2 + $0x20] sm:$0xff]
  %v180 = vld [vmem:[%s2 + $0x28] sm:$0xff]
  %v181 = vld [vmem:[%s2 + $0x30] sm:$0xff]
  %v182 = vld [vmem:[%s2 + $0x38] sm:$0xff]
  %v183 = vld [vmem:[%s2 + $0x40] sm:$0xf]
  %v184 = vld [vmem:[%s2 + $0x48] sm:$0xf]
  %v185 = vld [vmem:[%s2 + $0x50] sm:$0xf]
  %v186 = vld [vmem:[%s2 + $0x58] sm:$0xf]
  %vm187 = vcmask 162816
  %v189 = vsel %vm187, %v174, 0
  %vm191 = vcmask 1043456
  %v193 = vsel %vm191, %v183, 0
  %v196 = vsel %vm191, %v184, 0
  %v199 = vsel %vm191, %v185, 0
  %v202 = vsel %vm191, %v186, 0
  %204 = vmatpush.msra.mxu0 0.0
  %205 = vmatpush.msra.mxu0 0.0
  %206 = vmatpush.msra.mxu0 0.0
  %207 = vmatpush.msra.mxu0 0.0
  %208 = vmatpush.msra.mxu0 0.0
  %209 = vmatpush.msra.mxu0 0.0
  %210 = vmatpush.msra.mxu0 0.0
  %211 = vmatpush.msra.mxu0 0.0
  %212 = vmatpush.msra.mxu0 0.0
  %213 = vmatpush.msra.mxu0 0.0
  %214 = vmatpush.msra.mxu0 0.0
  %215 = vmatpush.msra.mxu0 0.0
  %216 = vmatpush.msra.mxu0 0.0
  %217 = vmatpush.msra.mxu0 %v193
  %218 = vmatpush.msra.mxu0 %v179
  %219 = vmatpush.msra.mxu0 %v175
  %220 = vmatmul.f32.gmra.mxu0 %v189
  %v221 = vpop.f32.mrf.mxu0
  %v222 = vadd.f32 0.0, %v221
  %223 = vdwg.mxu0
  %224 = vmatpush.msra.mxu0 0.0
  %225 = vmatpush.msra.mxu0 0.0
  %226 = vmatpush.msra.mxu0 0.0
  %227 = vmatpush.msra.mxu0 0.0
  %228 = vmatpush.msra.mxu0 0.0
  %229 = vmatpush.msra.mxu0 0.0
  %230 = vmatpush.msra.mxu0 0.0
  %231 = vmatpush.msra.mxu0 0.0
  %232 = vmatpush.msra.mxu0 0.0
  %233 = vmatpush.msra.mxu0 0.0
  %234 = vmatpush.msra.mxu0 0.0
  %235 = vmatpush.msra.mxu0 0.0
  %236 = vmatpush.msra.mxu0 0.0
  %237 = vmatpush.msra.mxu0 %v196
  %238 = vmatpush.msra.mxu0 %v180
  %239 = vmatpush.msra.mxu0 %v176
  %240 = vmatmul.f32.gmra.mxu0 %v189
  %v241 = vpop.f32.mrf.mxu0
  %v242 = vadd.f32 0.0, %v241
  %243 = vdwg.mxu0
  %244 = vmatpush.msra.mxu0 0.0
  %245 = vmatpush.msra.mxu0 0.0
  %246 = vmatpush.msra.mxu0 0.0
  %247 = vmatpush.msra.mxu0 0.0
  %248 = vmatpush.msra.mxu0 0.0
  %249 = vmatpush.msra.mxu0 0.0
  %250 = vmatpush.msra.mxu0 0.0
  %251 = vmatpush.msra.mxu0 0.0
  %252 = vmatpush.msra.mxu0 0.0
  %253 = vmatpush.msra.mxu0 0.0
  %254 = vmatpush.msra.mxu0 0.0
  %255 = vmatpush.msra.mxu0 0.0
  %256 = vmatpush.msra.mxu0 0.0
  %257 = vmatpush.msra.mxu0 %v199
  %258 = vmatpush.msra.mxu0 %v181
  %259 = vmatpush.msra.mxu0 %v177
  %260 = vmatmul.f32.gmra.mxu0 %v189
  %v261 = vpop.f32.mrf.mxu0
  %v262 = vadd.f32 0.0, %v261
  %263 = vdwg.mxu0
  %264 = vmatpush.msra.mxu0 0.0
  %265 = vmatpush.msra.mxu0 0.0
  %266 = vmatpush.msra.mxu0 0.0
  %267 = vmatpush.msra.mxu0 0.0
  %268 = vmatpush.msra.mxu0 0.0
  %269 = vmatpush.msra.mxu0 0.0
  %270 = vmatpush.msra.mxu0 0.0
  %271 = vmatpush.msra.mxu0 0.0
  %272 = vmatpush.msra.mxu0 0.0
  %273 = vmatpush.msra.mxu0 0.0
  %274 = vmatpush.msra.mxu0 0.0
  %275 = vmatpush.msra.mxu0 0.0
  %276 = vmatpush.msra.mxu0 0.0
  %277 = vmatpush.msra.mxu0 %v202
  %278 = vmatpush.msra.mxu0 %v182
  %279 = vmatpush.msra.mxu0 %v178
  %280 = vmatmul.f32.gmra.mxu0 %v189
  %v281 = vpop.f32.mrf.mxu0
  %v282 = vadd.f32 0.0, %v281
  %283 = vdwg.mxu0
  %v284 = vadd.f32 %v22, %v222
  %v285 = vadd.f32 %v23, %v242
  %v286 = vadd.f32 %v24, %v262
  %v287 = vadd.f32 %v25, %v282
  %288 = vst [vmem:[%s5] sm:$0xff] %v284
  %289 = vst [vmem:[%s5 + $0x8] sm:$0xff] %v285
  %290 = vst [vmem:[%s5 + $0x10] sm:$0xff] %v286
  %291 = vst.msk [vmem:[%s5 + $0x18] sm:$0xff] %vm86, %v287
  %v292 = vmul.f32 %v174, %v174
  %v293 = vsub.f32 1.0, %v292
  %v294 = vld [vmem:[%s4] sm:$0x1]
  %v296 = vperm.slane %v294, 0
  %v298 = vmul.f32 %v296, %v293
  %v299 = vadd.f32 %v298, 1.0
  %v300 = vlog2.pop %v299
  %v301 = vmul.f32 %v300, 0.6931472
  %v302 = vmul.f32 -0.5, %v298
  %v303 = vadd.f32 %v302, 1.0
  %v304 = vmul.f32 %v303, %v298
  %v305 = vand.u32 2147483647, %v298
  %vm306 = vcmp.lt.f32.partialorder %v305, 0.0004427343
  %v307 = vsel %vm306, %v304, %v301
  %v309 = vsel %vm187, %v307, 0
  %v312 = vsel %vm191, 1.0, 0
  %314 = vmatpush.msra.mxu0 0.0
  %315 = vmatpush.msra.mxu0 0.0
  %316 = vmatpush.msra.mxu0 0.0
  %317 = vmatpush.msra.mxu0 0.0
  %318 = vmatpush.msra.mxu0 0.0
  %319 = vmatpush.msra.mxu0 0.0
  %320 = vmatpush.msra.mxu0 0.0
  %321 = vmatpush.msra.mxu0 0.0
  %322 = vmatpush.msra.mxu0 0.0
  %323 = vmatpush.msra.mxu0 0.0
  %324 = vmatpush.msra.mxu0 0.0
  %325 = vmatpush.msra.mxu0 0.0
  %326 = vmatpush.msra.mxu0 0.0
  %327 = vmatpush.msra.mxu0 %v312
  %328 = vmatpush.msra.mxu0 1.0
  %329 = vmatpush.msra.mxu0 1.0
  %330 = vmatmul.f32.gmra.mxu0 %v309
  %v331 = vpop.f32.mrf.mxu0
  %v332 = vadd.f32 0.0, %v331
  %333 = vdwg.mxu0
  %vm334 = vcmask 7168
  %335 = vst.msk [vmem:[%s6] sm:$0xff] %vm334, %v332
  // Predicated region
  $region22: #{_sylvester_flow_impl.1} parent=0 // pred_check
    _
  $region23: #{_sylvester_flow_impl.1} parent=0 // pred_check_branch
    %337 = sbr.rel (0) target = $region25
  $region24: #{_sylvester_flow_impl.1} parent=0 // pred_region
    _
  $region25: #{_sylvester_flow_impl.1} parent=0 // pred_fallthru
    _
  // Predicated region
  $region26: #{_sylvester_flow_impl.1} parent=0 // pred_check
    _
  $region27: #{_sylvester_flow_impl.1} parent=0 // pred_check_branch
    %339 = sbr.rel (0) target = $region29
  $region28: #{_sylvester_flow_impl.1} parent=0 // pred_region
    _
  $region29: #{_sylvester_flow_impl.1} parent=0 // pred_fallthru
    _
  // Predicated region
  $region30: #{_sylvester_flow_impl.1} parent=0 // pred_check
    _
  $region31: #{_sylvester_flow_impl.1} parent=0 // pred_check_branch
    %341 = sbr.rel (0) target = $region33
  $region32: #{_sylvester_flow_impl.1} parent=0 // pred_region
    _
  $region33: #{_sylvester_flow_impl.1} parent=0 // pred_fallthru
    _
  // Predicated region
  $region34: #{_sylvester_flow_impl.1} parent=0 // pred_check
    _
  $region35: #{_sylvester_flow_impl.1} parent=0 // pred_check_branch
    %343 = sbr.rel (0) target = $region37
  $region36: #{_sylvester_flow_impl.1} parent=0 // pred_region
    _
  $region37: #{_sylvester_flow_impl.1} parent=0 // pred_fallthru
    _

</llo_original>
